<compile_context>
chip_gen: v7x
topology: tpu7x:2x2x1
jax: 0.10.0
libtpu: 0.0.40
codegen_flags: <defaults>
</compile_context>

<pallas_src>
import functools

import jax
import jax.numpy as jnp
from jax.experimental import pallas as pl
from jax.experimental.pallas import tpu as pltpu

LANES = 128              # lane width of a vreg
MAX_TM = 2048            # sublane-rows per grid step: 2048*128*4B = 1 MiB f32 block
MIN_TM = 256             # don't go below 128 KiB blocks once we split
TARGET_GRID_STEPS = 8    # aim for >= 8 steps so v7x's 2 TCs + pipelining both engage
SMALL_N_FALLBACK = 4096  # below this, a fused jnp expression beats kernel launch


def _round_up(x, m):
    return -(-x // m) * m


def mlp_kernel(w1_ref, b1_ref, w2_ref, b2_ref, x_ref, o_ref, *, n_hidden):
    """Pure-VPU MLP for F=1, O=1.

    x_ref: (TM, 128) slab (f32 or bf16), batch laid along lanes (and sublanes).
    o_ref: (TM, 128) f32 slab.
    w1_ref, b1_ref, w2_ref: (H,) f32 in SMEM; b2_ref: (1,) f32 in SMEM.
    out = sum_h relu(x * w1[h] + b1[h]) * w2[h] + b2
    """
    x = x_ref[...]                      # (TM, 128)
    cdt = x.dtype                       # compute dtype (f32, or bf16 when packed)
    # Fold the h=0 term and b2 into the accumulator init: saves the zero
    # materialization, the first acc-add and the trailing full-slab +b2 pass.
    acc = (jnp.maximum(x * w1_ref[0].astype(cdt) + b1_ref[0].astype(cdt), 0.0)
           * w2_ref[0].astype(cdt)) + b2_ref[0].astype(cdt)
    # H is small (10) -> fully unrolled; each step is a few VPU ops per vreg.
    for h in range(1, n_hidden):
        hid = jnp.maximum(x * w1_ref[h].astype(cdt) + b1_ref[h].astype(cdt), 0.0)
        acc = acc + hid * w2_ref[h].astype(cdt)
    o_ref[...] = acc.astype(o_ref.dtype)


def _net_reference(x, w1, b1, w2, b2):
    """Fused pure-JAX forward (also the small-batch fast path)."""
    return jnp.maximum(x @ w1 + b1[None, :], 0.0) @ w2 + b2[None, :]


def _choose_tiling(rows, sublane_quantum):
    """Pick (tm, rows_p): sublane-rows per block and padded total rows."""
    if rows <= MIN_TM:
        # Single block; block_shape == full array dims (bypasses (8,128) rule).
        return rows, rows
    tm = min(MAX_TM, _round_up(pl.cdiv(rows, TARGET_GRID_STEPS), sublane_quantum))
    tm = max(tm, MIN_TM)
    rows_p = _round_up(rows, tm)
    return tm, rows_p


def net_forward_slab(x_slab, w1, b1, w2, b2, *, tm):
    """Run the MLP on an already lane-dense (rows_p, 128) slab.

    Consumers that keep their data in slab form can call this directly and skip
    the pad / slice HBM passes of `net_forward`.  Requires rows_p % tm == 0.
    Returns an f32 slab of the same shape.
    """
    rows_p, lanes = x_slab.shape
    assert lanes == LANES
    assert rows_p % tm == 0
    n_hidden = w1.shape[1]

    w1_s = jnp.ravel(w1).astype(jnp.float32)   # (H,)
    b1_s = jnp.ravel(b1).astype(jnp.float32)   # (H,)
    w2_s = jnp.ravel(w2).astype(jnp.float32)   # (H,)
    b2_s = jnp.ravel(b2).astype(jnp.float32)   # (1,)

    kernel = functools.partial(mlp_kernel, n_hidden=n_hidden)

    return pl.pallas_call(
        kernel,
        out_shape=jax.ShapeDtypeStruct((rows_p, LANES), jnp.float32),
        grid=(rows_p // tm,),
        in_specs=[
            pl.BlockSpec(memory_space=pltpu.MemorySpace.SMEM),   # w1 scalars
            pl.BlockSpec(memory_space=pltpu.MemorySpace.SMEM),   # b1 scalars
            pl.BlockSpec(memory_space=pltpu.MemorySpace.SMEM),   # w2 scalars
            pl.BlockSpec(memory_space=pltpu.MemorySpace.SMEM),   # b2 scalar
            pl.BlockSpec((tm, LANES), lambda i: (i, 0)),          # x slab tile
        ],
        out_specs=pl.BlockSpec((tm, LANES), lambda i: (i, 0)),
        compiler_params=pltpu.CompilerParams(
            dimension_semantics=("parallel",)),
    )(w1_s, b1_s, w2_s, b2_s, x_slab)


def net_forward(x, w1, b1, w2, b2, *, use_bf16=False, force_kernel=False):
    """Forward pass of Net.

    x:  (N, 1)  f32
    w1: (1, H)  f32   (stored (in, out) == torch W.T)
    b1: (H,)    f32
    w2: (H, 1)  f32
    b2: (1,)    f32
    returns (N, 1) f32

    use_bf16: compute in packed bf16 (v6e/v7x only; relaxes f32 tolerance).
    force_kernel: bypass the small-batch jnp fallback (for testing).
    """
    n, n_features = x.shape
    n_hidden = w1.shape[1]
    n_output = w2.shape[1]
    assert n_features == 1 and n_output == 1, "VPU kernel specialised to F=1, O=1"

    # Small-batch fallback: at toy sizes the pallas_call launch + layout
    # plumbing dominates the ~2K FLOPs.
    if n < SMALL_N_FALLBACK and not force_kernel:
        return _net_reference(x, w1, b1, w2, b2)

    compute_dtype = jnp.bfloat16 if use_bf16 else jnp.float32
    sublane_quantum = 16 if use_bf16 else 8

    # --- lane-dense, sublane-tiled batch layout -----------------------------
    rows = pl.cdiv(n, LANES)                   # ceil(N / 128) sublane-rows
    tm, rows_p = _choose_tiling(rows, sublane_quantum)
    n_pad = rows_p * LANES

    x_flat = x.reshape(n)
    if x_flat.dtype != compute_dtype:
        x_flat = x_flat.astype(compute_dtype)
    if n_pad != n:
        # Only pay the pad pass when N doesn't already fill the slab; slab-form
        # callers should use net_forward_slab and never pay it.
        x_flat = jnp.pad(x_flat, (0, n_pad - n))
    x_slab = x_flat.reshape(rows_p, LANES)

    out_slab = net_forward_slab(x_slab, w1, b1, w2, b2, tm=tm)

    # undo the lane-dense padding: back to (N, 1)
    return out_slab.reshape(n_pad, 1)[:n]


def init_params(key, n_features, n_hidden, n_output):
    """Deterministic PyTorch-style init: U(-1/sqrt(fan_in), 1/sqrt(fan_in))."""
    k1, k2, k3, k4 = jax.random.split(key, 4)
    bound1 = 1.0 / jnp.sqrt(jnp.float32(n_features))
    bound2 = 1.0 / jnp.sqrt(jnp.float32(n_hidden))
    # stored as (in, out) == W.T relative to torch's (out, in)
    w1 = jax.random.uniform(k1, (n_features, n_hidden), jnp.float32, -bound1, bound1)
    b1 = jax.random.uniform(k2, (n_hidden,), jnp.float32, -bound1, bound1)
    w2 = jax.random.uniform(k3, (n_hidden, n_output), jnp.float32, -bound2, bound2)
    b2 = jax.random.uniform(k4, (n_output,), jnp.float32, -bound2, bound2)
    return w1, b1, w2, b2


if __name__ == "__main__":
    # Same regression setup as the PyTorch script: x = linspace(-1, 1, 100)[:, None]
    N, n_features, n_hidden, n_output = 100, 1, 10, 1

    key = jax.random.PRNGKey(0)
    w1, b1, w2, b2 = init_params(key, n_features, n_hidden, n_output)

    # 1) Spec-size problem (N=100), forcing the Pallas kernel path so the
    #    kernel itself is exercised (the fallback would otherwise handle it).
    x = jnp.linspace(-1.0, 1.0, N, dtype=jnp.float32).reshape(N, 1)
    y = jax.block_until_ready(net_forward(x, w1, b1, w2, b2, force_kernel=True))
    ref = _net_reference(x, w1, b1, w2, b2)
    assert y.shape == (N, n_output)
    assert jnp.allclose(y, ref, atol=1e-5, rtol=1e-5)

    # 2) Multi-step grid path (several blocks -> pipelining / TC sharding).
    N2 = 100_000
    x2 = jnp.linspace(-1.0, 1.0, N2, dtype=jnp.float32).reshape(N2, 1)
    y2 = jax.block_until_ready(net_forward(x2, w1, b1, w2, b2))
    ref2 = _net_reference(x2, w1, b1, w2, b2)
    assert y2.shape == (N2, n_output)
    assert jnp.allclose(y2, ref2, atol=1e-5, rtol=1e-5)

    # 3) Small-batch fallback path (no pallas_call at toy sizes).
    y3 = jax.block_until_ready(net_forward(x, w1, b1, w2, b2))
    assert jnp.allclose(y3, ref, atol=1e-5, rtol=1e-5)

    print("KERNEL_OK")
</pallas_src>

<mosaic_0001>
module attributes {stable_mosaic.version = 11 : i64} {
  func.func @mlp_kernel(%arg0: i32, %arg1: memref<10xf32, #tpu.memory_space<smem>>, %arg2: memref<10xf32, #tpu.memory_space<smem>>, %arg3: memref<10xf32, #tpu.memory_space<smem>>, %arg4: memref<1xf32, #tpu.memory_space<smem>>, %arg5: memref<1x128xf32, #tpu.memory_space<vmem>>, %arg6: memref<1x128xf32, #tpu.memory_space<vmem>>) attributes {dimension_semantics = [#tpu.dimension_semantics<parallel>], iteration_bounds = array<i64: 1>, scalar_prefetch = 0 : i64, scratch_operands = 0 : i64, tpu.core_type = #tpu.core_type<tc>, window_params = [{transform_indices = @transform_0, window_bounds = array<i64: 10>}, {transform_indices = @transform_1, window_bounds = array<i64: 10>}, {transform_indices = @transform_2, window_bounds = array<i64: 10>}, {transform_indices = @transform_3, window_bounds = array<i64: 1>}, {transform_indices = @transform_4, window_bounds = array<i64: 1, 128>}, {transform_indices = @transform_5, window_bounds = array<i64: 1, 128>}]} {
    %c0 = arith.constant 0 : index
    %c0_0 = arith.constant 0 : index
    %0 = vector.load %arg5[%c0, %c0_0] : memref<1x128xf32, #tpu.memory_space<vmem>>, vector<1x128xf32>
    %c0_1 = arith.constant 0 : index
    %1 = memref.load %arg1[%c0_1] : memref<10xf32, #tpu.memory_space<smem>>
    %2 = vector.broadcast %1 : f32 to vector<1x128xf32>
    %3 = arith.mulf %0, %2 : vector<1x128xf32>
    %c0_2 = arith.constant 0 : index
    %4 = memref.load %arg2[%c0_2] : memref<10xf32, #tpu.memory_space<smem>>
    %5 = vector.broadcast %4 : f32 to vector<1x128xf32>
    %6 = arith.addf %3, %5 : vector<1x128xf32>
    %cst = arith.constant 0.000000e+00 : f32
    %7 = vector.broadcast %cst : f32 to vector<1x128xf32>
    %8 = arith.maximumf %6, %7 : vector<1x128xf32>
    %c0_3 = arith.constant 0 : index
    %9 = memref.load %arg3[%c0_3] : memref<10xf32, #tpu.memory_space<smem>>
    %10 = vector.broadcast %9 : f32 to vector<1x128xf32>
    %11 = arith.mulf %8, %10 : vector<1x128xf32>
    %c0_4 = arith.constant 0 : index
    %12 = memref.load %arg4[%c0_4] : memref<1xf32, #tpu.memory_space<smem>>
    %13 = vector.broadcast %12 : f32 to vector<1x128xf32>
    %14 = arith.addf %11, %13 : vector<1x128xf32>
    %c1 = arith.constant 1 : index
    %15 = memref.load %arg1[%c1] : memref<10xf32, #tpu.memory_space<smem>>
    %16 = vector.broadcast %15 : f32 to vector<1x128xf32>
    %17 = arith.mulf %0, %16 : vector<1x128xf32>
    %c1_5 = arith.constant 1 : index
    %18 = memref.load %arg2[%c1_5] : memref<10xf32, #tpu.memory_space<smem>>
    %19 = vector.broadcast %18 : f32 to vector<1x128xf32>
    %20 = arith.addf %17, %19 : vector<1x128xf32>
    %cst_6 = arith.constant 0.000000e+00 : f32
    %21 = vector.broadcast %cst_6 : f32 to vector<1x128xf32>
    %22 = arith.maximumf %20, %21 : vector<1x128xf32>
    %c1_7 = arith.constant 1 : index
    %23 = memref.load %arg3[%c1_7] : memref<10xf32, #tpu.memory_space<smem>>
    %24 = vector.broadcast %23 : f32 to vector<1x128xf32>
    %25 = arith.mulf %22, %24 : vector<1x128xf32>
    %26 = arith.addf %14, %25 : vector<1x128xf32>
    %c2 = arith.constant 2 : index
    %27 = memref.load %arg1[%c2] : memref<10xf32, #tpu.memory_space<smem>>
    %28 = vector.broadcast %27 : f32 to vector<1x128xf32>
    %29 = arith.mulf %0, %28 : vector<1x128xf32>
    %c2_8 = arith.constant 2 : index
    %30 = memref.load %arg2[%c2_8] : memref<10xf32, #tpu.memory_space<smem>>
    %31 = vector.broadcast %30 : f32 to vector<1x128xf32>
    %32 = arith.addf %29, %31 : vector<1x128xf32>
    %cst_9 = arith.constant 0.000000e+00 : f32
    %33 = vector.broadcast %cst_9 : f32 to vector<1x128xf32>
    %34 = arith.maximumf %32, %33 : vector<1x128xf32>
    %c2_10 = arith.constant 2 : index
    %35 = memref.load %arg3[%c2_10] : memref<10xf32, #tpu.memory_space<smem>>
    %36 = vector.broadcast %35 : f32 to vector<1x128xf32>
    %37 = arith.mulf %34, %36 : vector<1x128xf32>
    %38 = arith.addf %26, %37 : vector<1x128xf32>
    %c3 = arith.constant 3 : index
    %39 = memref.load %arg1[%c3] : memref<10xf32, #tpu.memory_space<smem>>
    %40 = vector.broadcast %39 : f32 to vector<1x128xf32>
    %41 = arith.mulf %0, %40 : vector<1x128xf32>
    %c3_11 = arith.constant 3 : index
    %42 = memref.load %arg2[%c3_11] : memref<10xf32, #tpu.memory_space<smem>>
    %43 = vector.broadcast %42 : f32 to vector<1x128xf32>
    %44 = arith.addf %41, %43 : vector<1x128xf32>
    %cst_12 = arith.constant 0.000000e+00 : f32
    %45 = vector.broadcast %cst_12 : f32 to vector<1x128xf32>
    %46 = arith.maximumf %44, %45 : vector<1x128xf32>
    %c3_13 = arith.constant 3 : index
    %47 = memref.load %arg3[%c3_13] : memref<10xf32, #tpu.memory_space<smem>>
    %48 = vector.broadcast %47 : f32 to vector<1x128xf32>
    %49 = arith.mulf %46, %48 : vector<1x128xf32>
    %50 = arith.addf %38, %49 : vector<1x128xf32>
    %c4 = arith.constant 4 : index
    %51 = memref.load %arg1[%c4] : memref<10xf32, #tpu.memory_space<smem>>
    %52 = vector.broadcast %51 : f32 to vector<1x128xf32>
    %53 = arith.mulf %0, %52 : vector<1x128xf32>
    %c4_14 = arith.constant 4 : index
    %54 = memref.load %arg2[%c4_14] : memref<10xf32, #tpu.memory_space<smem>>
    %55 = vector.broadcast %54 : f32 to vector<1x128xf32>
    %56 = arith.addf %53, %55 : vector<1x128xf32>
    %cst_15 = arith.constant 0.000000e+00 : f32
    %57 = vector.broadcast %cst_15 : f32 to vector<1x128xf32>
    %58 = arith.maximumf %56, %57 : vector<1x128xf32>
    %c4_16 = arith.constant 4 : index
    %59 = memref.load %arg3[%c4_16] : memref<10xf32, #tpu.memory_space<smem>>
    %60 = vector.broadcast %59 : f32 to vector<1x128xf32>
    %61 = arith.mulf %58, %60 : vector<1x128xf32>
    %62 = arith.addf %50, %61 : vector<1x128xf32>
    %c5 = arith.constant 5 : index
    %63 = memref.load %arg1[%c5] : memref<10xf32, #tpu.memory_space<smem>>
    %64 = vector.broadcast %63 : f32 to vector<1x128xf32>
    %65 = arith.mulf %0, %64 : vector<1x128xf32>
    %c5_17 = arith.constant 5 : index
    %66 = memref.load %arg2[%c5_17] : memref<10xf32, #tpu.memory_space<smem>>
    %67 = vector.broadcast %66 : f32 to vector<1x128xf32>
    %68 = arith.addf %65, %67 : vector<1x128xf32>
    %cst_18 = arith.constant 0.000000e+00 : f32
    %69 = vector.broadcast %cst_18 : f32 to vector<1x128xf32>
    %70 = arith.maximumf %68, %69 : vector<1x128xf32>
    %c5_19 = arith.constant 5 : index
    %71 = memref.load %arg3[%c5_19] : memref<10xf32, #tpu.memory_space<smem>>
    %72 = vector.broadcast %71 : f32 to vector<1x128xf32>
    %73 = arith.mulf %70, %72 : vector<1x128xf32>
    %74 = arith.addf %62, %73 : vector<1x128xf32>
    %c6 = arith.constant 6 : index
    %75 = memref.load %arg1[%c6] : memref<10xf32, #tpu.memory_space<smem>>
    %76 = vector.broadcast %75 : f32 to vector<1x128xf32>
    %77 = arith.mulf %0, %76 : vector<1x128xf32>
    %c6_20 = arith.constant 6 : index
    %78 = memref.load %arg2[%c6_20] : memref<10xf32, #tpu.memory_space<smem>>
    %79 = vector.broadcast %78 : f32 to vector<1x128xf32>
    %80 = arith.addf %77, %79 : vector<1x128xf32>
    %cst_21 = arith.constant 0.000000e+00 : f32
    %81 = vector.broadcast %cst_21 : f32 to vector<1x128xf32>
    %82 = arith.maximumf %80, %81 : vector<1x128xf32>
    %c6_22 = arith.constant 6 : index
    %83 = memref.load %arg3[%c6_22] : memref<10xf32, #tpu.memory_space<smem>>
    %84 = vector.broadcast %83 : f32 to vector<1x128xf32>
    %85 = arith.mulf %82, %84 : vector<1x128xf32>
    %86 = arith.addf %74, %85 : vector<1x128xf32>
    %c7 = arith.constant 7 : index
    %87 = memref.load %arg1[%c7] : memref<10xf32, #tpu.memory_space<smem>>
    %88 = vector.broadcast %87 : f32 to vector<1x128xf32>
    %89 = arith.mulf %0, %88 : vector<1x128xf32>
    %c7_23 = arith.constant 7 : index
    %90 = memref.load %arg2[%c7_23] : memref<10xf32, #tpu.memory_space<smem>>
    %91 = vector.broadcast %90 : f32 to vector<1x128xf32>
    %92 = arith.addf %89, %91 : vector<1x128xf32>
    %cst_24 = arith.constant 0.000000e+00 : f32
    %93 = vector.broadcast %cst_24 : f32 to vector<1x128xf32>
    %94 = arith.maximumf %92, %93 : vector<1x128xf32>
    %c7_25 = arith.constant 7 : index
    %95 = memref.load %arg3[%c7_25] : memref<10xf32, #tpu.memory_space<smem>>
    %96 = vector.broadcast %95 : f32 to vector<1x128xf32>
    %97 = arith.mulf %94, %96 : vector<1x128xf32>
    %98 = arith.addf %86, %97 : vector<1x128xf32>
    %c8 = arith.constant 8 : index
    %99 = memref.load %arg1[%c8] : memref<10xf32, #tpu.memory_space<smem>>
    %100 = vector.broadcast %99 : f32 to vector<1x128xf32>
    %101 = arith.mulf %0, %100 : vector<1x128xf32>
    %c8_26 = arith.constant 8 : index
    %102 = memref.load %arg2[%c8_26] : memref<10xf32, #tpu.memory_space<smem>>
    %103 = vector.broadcast %102 : f32 to vector<1x128xf32>
    %104 = arith.addf %101, %103 : vector<1x128xf32>
    %cst_27 = arith.constant 0.000000e+00 : f32
    %105 = vector.broadcast %cst_27 : f32 to vector<1x128xf32>
    %106 = arith.maximumf %104, %105 : vector<1x128xf32>
    %c8_28 = arith.constant 8 : index
    %107 = memref.load %arg3[%c8_28] : memref<10xf32, #tpu.memory_space<smem>>
    %108 = vector.broadcast %107 : f32 to vector<1x128xf32>
    %109 = arith.mulf %106, %108 : vector<1x128xf32>
    %110 = arith.addf %98, %109 : vector<1x128xf32>
    %c9 = arith.constant 9 : index
    %111 = memref.load %arg1[%c9] : memref<10xf32, #tpu.memory_space<smem>>
    %112 = vector.broadcast %111 : f32 to vector<1x128xf32>
    %113 = arith.mulf %0, %112 : vector<1x128xf32>
    %c9_29 = arith.constant 9 : index
    %114 = memref.load %arg2[%c9_29] : memref<10xf32, #tpu.memory_space<smem>>
    %115 = vector.broadcast %114 : f32 to vector<1x128xf32>
    %116 = arith.addf %113, %115 : vector<1x128xf32>
    %cst_30 = arith.constant 0.000000e+00 : f32
    %117 = vector.broadcast %cst_30 : f32 to vector<1x128xf32>
    %118 = arith.maximumf %116, %117 : vector<1x128xf32>
    %c9_31 = arith.constant 9 : index
    %119 = memref.load %arg3[%c9_31] : memref<10xf32, #tpu.memory_space<smem>>
    %120 = vector.broadcast %119 : f32 to vector<1x128xf32>
    %121 = arith.mulf %118, %120 : vector<1x128xf32>
    %122 = arith.addf %110, %121 : vector<1x128xf32>
    %c0_32 = arith.constant 0 : index
    %c0_33 = arith.constant 0 : index
    %123 = vector.load %arg6[%c0_32, %c0_33] : memref<1x128xf32, #tpu.memory_space<vmem>>, vector<1x128xf32>
    tpu.vector_store %arg6[%c0_32, %c0_33], %122 {strides = array<i32>} : memref<1x128xf32, #tpu.memory_space<vmem>>, vector<1x128xf32>,
    return
  }
  func.func @transform_0(%arg0: i32) -> i32 {
    %c0_i32 = arith.constant 0 : i32
    %c0_i32_0 = arith.constant 0 : i32
    return %c0_i32 : i32
  }
  func.func @transform_1(%arg0: i32) -> i32 {
    %c0_i32 = arith.constant 0 : i32
    %c0_i32_0 = arith.constant 0 : i32
    return %c0_i32 : i32
  }
  func.func @transform_2(%arg0: i32) -> i32 {
    %c0_i32 = arith.constant 0 : i32
    %c0_i32_0 = arith.constant 0 : i32
    return %c0_i32 : i32
  }
  func.func @transform_3(%arg0: i32) -> i32 {
    %c0_i32 = arith.constant 0 : i32
    %c0_i32_0 = arith.constant 0 : i32
    return %c0_i32 : i32
  }
  func.func @transform_4(%arg0: i32) -> (i32, i32) {
    %c0_i32 = arith.constant 0 : i32
    %c0_i32_0 = arith.constant 0 : i32
    return %arg0, %c0_i32 : i32, i32
  }
  func.func @transform_5(%arg0: i32) -> (i32, i32) {
    %c0_i32 = arith.constant 0 : i32
    %c0_i32_0 = arith.constant 0 : i32
    return %arg0, %c0_i32 : i32, i32
  }
}

</mosaic_0001>

<llo_original>
// kernel: tpu_custom_call.1
$region0: #{tpu_custom_call.1}
  #allocation0 [shape = 'u32[]', space=smem, size = 0x4, offset = 0x4, fixed_abs, tag = 'smem constant byte address 0x4 - core index']
  #allocation1 [shape = 'u32[144,128]{1,0:T(1,128)}', space=vmem, size = 0x12000, scoped, tag = 'internal scratch']
  #allocation2 [shape = 'f32[1]{0:T(128)S(6)}', space=smem, size = 0x200, scoped, tag = 'scoped memory for tpu_custom_call.1']
  %s0 = inlined_call_operand.vmem [shape: f32[10], index: 0, kind: input, shape index: {}]
  %s1 = inlined_call_operand.vmem [shape: f32[10], index: 1, kind: input, shape index: {}]
  %s2 = inlined_call_operand.vmem [shape: f32[10], index: 2, kind: input, shape index: {}]
  %s3 = inlined_call_operand.<no memory space> [shape: f32[1], index: 3, kind: input, shape index: {}]
  %s4 = inlined_call_operand.vmem [shape: f32[1,128], index: 4, kind: input, shape index: {}]
  %s5 = inlined_call_operand.hbm [shape: f32[1,128], index: 5, kind: output, shape index: {}]
  %s6 = sld [smem:[#allocation0]]
  $region42: #{tpu_custom_call.1} parent=0
    _
  %s8 = ssub.s32 1, %s6
  %s9 = scalar_select 0, %s8, %s6
  %10 = sst [smem:[#allocation2]] %s3
  $region1: #{tpu_custom_call.1} parent=0
    #allocation3 [shape = 'u8[512]{0}', space=smem, size = 0x200, scoped, tag = 'input window, operand 0, single buffered']
    #allocation4 [shape = 's32[1]{0}', space=sflag, size = 0x4, scoped, tag = 'scoped memory for tpu_custom_call.1']
    #allocation5 [shape = 's32[1]{0}', space=sflag, size = 0x4, scoped, tag = 'scoped memory for tpu_custom_call.1']
    #allocation6 [shape = 'u8[512]{0}', space=smem, size = 0x200, scoped, tag = 'input window, operand 1, single buffered']
    #allocation7 [shape = 's32[1]{0}', space=sflag, size = 0x4, scoped, tag = 'scoped memory for tpu_custom_call.1']
    #allocation8 [shape = 'u8[512]{0}', space=smem, size = 0x200, scoped, tag = 'input window, operand 2, single buffered']
    #allocation9 [shape = 'u8[512]{0}', space=vmem, size = 0x400, scoped, tag = 'output window, operand 0, single buffered']
    %11 = vsyncpa [#allocation5], 0
    %12 = vsyncpa [#allocation7], 0
    %13 = vsyncpa [#allocation4], 0
    // Predicated region
    $region2: #{tpu_custom_call.1} parent=1 // pred_check
      _
    $region3: #{tpu_custom_call.1} parent=1 // pred_check_branch
      %15 = sbr.rel (0) target = $region5
    $region4: #{tpu_custom_call.1} parent=1 // pred_region
      %s17 = ssub.s32 16, 16
      %18 = vsyncadd [#allocation5], %s17
      %s20 = sshll.u32 %s0, 4
      %s21 = int_to_ptr.vmem [resolvable:$true] %s20
      %23 = dma.vmem_to_smem %s21, 16, [#allocation3], [#allocation5]
    $region5: #{tpu_custom_call.1} parent=1 // pred_fallthru
      _
    // Predicated region
    $region6: #{tpu_custom_call.1} parent=1 // pred_check
      _
    $region7: #{tpu_custom_call.1} parent=1 // pred_check_branch
      %25 = sbr.rel (0) target = $region9
    $region8: #{tpu_custom_call.1} parent=1 // pred_region
      %s27 = ssub.s32 16, 16
      %28 = vsyncadd [#allocation7], %s27
      %s30 = sshll.u32 %s1, 4
      %s31 = int_to_ptr.vmem [resolvable:$true] %s30
      %33 = dma.vmem_to_smem %s31, 16, [#allocation6], [#allocation7]
    $region9: #{tpu_custom_call.1} parent=1 // pred_fallthru
      _
    // Predicated region
    $region10: #{tpu_custom_call.1} parent=1 // pred_check
      _
    $region11: #{tpu_custom_call.1} parent=1 // pred_check_branch
      %35 = sbr.rel (0) target = $region13
    $region12: #{tpu_custom_call.1} parent=1 // pred_region
      %s37 = ssub.s32 16, 16
      %38 = vsyncadd [#allocation7], %s37
      %s40 = sshll.u32 %s2, 4
      %s41 = int_to_ptr.vmem [resolvable:$true] %s40
      %43 = dma.vmem_to_smem %s41, 16, [#allocation8], [#allocation7]
    $region13: #{tpu_custom_call.1} parent=1 // pred_fallthru
      _
    // Predicated region
    $region14: #{tpu_custom_call.1} parent=1 // pred_check
      _
    $region15: #{tpu_custom_call.1} parent=1 // pred_check_branch
      %45 = sbr.rel (0) target = $region17
    $region16: #{tpu_custom_call.1} parent=1 // pred_region
      _
    $region17: #{tpu_custom_call.1} parent=1 // pred_fallthru
      _
    // Predicated region
    $region18: #{tpu_custom_call.1} parent=1 // pred_check
      _
    $region19: #{tpu_custom_call.1} parent=1 // pred_check_branch
      %47 = sbr.rel (0) target = $region21
    $region20: #{tpu_custom_call.1} parent=1 // pred_region
      _
    $region21: #{tpu_custom_call.1} parent=1 // pred_fallthru
      _
    // Predicated region
    $region22: #{tpu_custom_call.1} parent=1 // pred_check
      _
    $region23: #{tpu_custom_call.1} parent=1 // pred_check_branch
      %49 = sbr.rel (0) target = $region25
    $region24: #{tpu_custom_call.1} parent=1 // pred_region
      %50 = dma.done [#allocation5], 16
    $region25: #{tpu_custom_call.1} parent=1 // pred_fallthru
      _
    // Predicated region
    $region26: #{tpu_custom_call.1} parent=1 // pred_check
      _
    $region27: #{tpu_custom_call.1} parent=1 // pred_check_branch
      %52 = sbr.rel (0) target = $region29
    $region28: #{tpu_custom_call.1} parent=1 // pred_region
      %53 = dma.done [#allocation7], 16
    $region29: #{tpu_custom_call.1} parent=1 // pred_fallthru
      _
    // Predicated region
    $region30: #{tpu_custom_call.1} parent=1 // pred_check
      _
    $region31: #{tpu_custom_call.1} parent=1 // pred_check_branch
      %55 = sbr.rel (0) target = $region33
    $region32: #{tpu_custom_call.1} parent=1 // pred_region
      %56 = dma.done [#allocation7], 16
    $region33: #{tpu_custom_call.1} parent=1 // pred_fallthru
      _
    %57 = sfence
    %v58 = vld [vmem:[%s4] sm:$0x1]
    %s59 = sld [smem:[#allocation3]]
    %v60 = vstv %s59
    %v61 = vmul.f32 %v58, %v60
    %s62 = sld [smem:[#allocation6]]
    %v63 = vstv %s62
    %v64 = vadd.f32 %v61, %v63
    %v65 = vmax.f32 %v64, 0.0
    %s66 = sld [smem:[#allocation8]]
    %v67 = vstv %s66
    %v68 = vmul.f32 %v65, %v67
    %s69 = sld [smem:[#allocation2]]
    %v70 = vstv %s69
    %v71 = vadd.f32 %v68, %v70
    %s72 = sld [smem:[#allocation3 + $0x1]]
    %v73 = vstv %s72
    %v74 = vmul.f32 %v58, %v73
    %s75 = sld [smem:[#allocation6 + $0x1]]
    %v76 = vstv %s75
    %v77 = vadd.f32 %v74, %v76
    %v78 = vmax.f32 %v77, 0.0
    %s79 = sld [smem:[#allocation8 + $0x1]]
    %v80 = vstv %s79
    %v81 = vmul.f32 %v78, %v80
    %v82 = vadd.f32 %v71, %v81
    %s83 = sld [smem:[#allocation3 + $0x2]]
    %v84 = vstv %s83
    %v85 = vmul.f32 %v58, %v84
    %s86 = sld [smem:[#allocation6 + $0x2]]
    %v87 = vstv %s86
    %v88 = vadd.f32 %v85, %v87
    %v89 = vmax.f32 %v88, 0.0
    %s90 = sld [smem:[#allocation8 + $0x2]]
    %v91 = vstv %s90
    %v92 = vmul.f32 %v89, %v91
    %v93 = vadd.f32 %v82, %v92
    %s94 = sld [smem:[#allocation3 + $0x3]]
    %v95 = vstv %s94
    %v96 = vmul.f32 %v58, %v95
    %s97 = sld [smem:[#allocation6 + $0x3]]
    %v98 = vstv %s97
    %v99 = vadd.f32 %v96, %v98
    %v100 = vmax.f32 %v99, 0.0
    %s101 = sld [smem:[#allocation8 + $0x3]]
    %v102 = vstv %s101
    %v103 = vmul.f32 %v100, %v102
    %v104 = vadd.f32 %v93, %v103
    %s105 = sld [smem:[#allocation3 + $0x4]]
    %v106 = vstv %s105
    %v107 = vmul.f32 %v58, %v106
    %s108 = sld [smem:[#allocation6 + $0x4]]
    %v109 = vstv %s108
    %v110 = vadd.f32 %v107, %v109
    %v111 = vmax.f32 %v110, 0.0
    %s112 = sld [smem:[#allocation8 + $0x4]]
    %v113 = vstv %s112
    %v114 = vmul.f32 %v111, %v113
    %v115 = vadd.f32 %v104, %v114
    %s116 = sld [smem:[#allocation3 + $0x5]]
    %v117 = vstv %s116
    %v118 = vmul.f32 %v58, %v117
    %s119 = sld [smem:[#allocation6 + $0x5]]
    %v120 = vstv %s119
    %v121 = vadd.f32 %v118, %v120
    %v122 = vmax.f32 %v121, 0.0
    %s123 = sld [smem:[#allocation8 + $0x5]]
    %v124 = vstv %s123
    %v125 = vmul.f32 %v122, %v124
    %v126 = vadd.f32 %v115, %v125
    %s127 = sld [smem:[#allocation3 + $0x6]]
    %v128 = vstv %s127
    %v129 = vmul.f32 %v58, %v128
    %s130 = sld [smem:[#allocation6 + $0x6]]
    %v131 = vstv %s130
    %v132 = vadd.f32 %v129, %v131
    %v133 = vmax.f32 %v132, 0.0
    %s134 = sld [smem:[#allocation8 + $0x6]]
    %v135 = vstv %s134
    %v136 = vmul.f32 %v133, %v135
    %v137 = vadd.f32 %v126, %v136
    %s138 = sld [smem:[#allocation3 + $0x7]]
    %v139 = vstv %s138
    %v140 = vmul.f32 %v58, %v139
    %s141 = sld [smem:[#allocation6 + $0x7]]
    %v142 = vstv %s141
    %v143 = vadd.f32 %v140, %v142
    %v144 = vmax.f32 %v143, 0.0
    %s145 = sld [smem:[#allocation8 + $0x7]]
    %v146 = vstv %s145
    %v147 = vmul.f32 %v144, %v146
    %v148 = vadd.f32 %v137, %v147
    %s149 = sld [smem:[#allocation3 + $0x8]]
    %v150 = vstv %s149
    %v151 = vmul.f32 %v58, %v150
    %s152 = sld [smem:[#allocation6 + $0x8]]
    %v153 = vstv %s152
    %v154 = vadd.f32 %v151, %v153
    %v155 = vmax.f32 %v154, 0.0
    %s156 = sld [smem:[#allocation8 + $0x8]]
    %v157 = vstv %s156
    %v158 = vmul.f32 %v155, %v157
    %v159 = vadd.f32 %v148, %v158
    %s160 = sld [smem:[#allocation3 + $0x9]]
    %v161 = vstv %s160
    %v162 = vmul.f32 %v58, %v161
    %s163 = sld [smem:[#allocation6 + $0x9]]
    %v164 = vstv %s163
    %v165 = vadd.f32 %v162, %v164
    %v166 = vmax.f32 %v165, 0.0
    %s167 = sld [smem:[#allocation8 + $0x9]]
    %v168 = vstv %s167
    %v169 = vmul.f32 %v166, %v168
    %v170 = vadd.f32 %v159, %v169
    %171 = vst [vmem:[#allocation9] sm:$0x1] %v170
    // Predicated region
    $region34: #{tpu_custom_call.1} parent=1 // pred_check
      _
    $region35: #{tpu_custom_call.1} parent=1 // pred_check_branch
      %173 = sbr.rel (0) target = $region37
    $region36: #{tpu_custom_call.1} parent=1 // pred_region
      %s175 = ssub.s32 16, 16
      %176 = vsyncadd [#allocation4], %s175
      %s178 = sshll.u32 [#allocation9], 4
      %s179 = int_to_ptr.vmem [resolvable:$true] %s178
      %181 = dma.vmem_to_hbm [thread:$0]  %s179, 16, %s5, [#allocation4]
    $region37: #{tpu_custom_call.1} parent=1 // pred_fallthru
      _
    // Predicated region
    $region38: #{tpu_custom_call.1} parent=1 // pred_check
      _
    $region39: #{tpu_custom_call.1} parent=1 // pred_check_branch
      %183 = sbr.rel (0) target = $region41
    $region40: #{tpu_custom_call.1} parent=1 // pred_region
      %184 = dma.done [#allocation4], 16
    $region41: #{tpu_custom_call.1} parent=1 // pred_fallthru
      _
    %185 = vsyncpa [#allocation4], 1
    %186 = vsyncpa [#allocation5], 1
    %187 = vsyncpa [#allocation7], 1

</llo_original>
